<compile_context>
chip_gen: v7x
topology: tpu7x:2x2x1
jax: 0.10.0
libtpu: 0.0.40
codegen_flags: <defaults>
</compile_context>

<pallas_src>
import jax
import jax.numpy as jnp
import numpy as np
from jax.experimental import pallas as pl
from jax.experimental.pallas import tpu as pltpu


def _leaky_relu(x, slope=0.1):
    return jnp.where(x >= 0, x, slope * x)


def _make_resblock_kernel(C, L, K, dilation, pad, nb, mxu_dtype):
    """Kernel over one (C, Lb) lane-dense activation block (Lb = nb * L)."""
    Lb = nb * L
    # Tap k of the conv reads x[:, t + k*dilation - pad] (zero outside [0, L)).
    offsets = [k * dilation - pad for k in range(K)]

    def kernel(x_ref, w1_ref, b1_ref, w2_ref, b2_ref, o_ref):
        # x_ref/o_ref: (C, Lb)   w*_ref: (K, C, C) mxu_dtype   b*_ref: (C, 1) f32
        x = x_ref[...].astype(jnp.float32)                     # residual

        # Hoisted per-tap boundary predicates (shared by both convs).
        # t_local = lane position inside each length-L batch segment; block
        # boundaries coincide with batch-element boundaries so mod is exact.
        t_local = jax.lax.broadcasted_iota(jnp.int32, (1, Lb), 1) % L
        masks = []
        for s in offsets:
            if s < 0:
                masks.append(t_local >= -s)
            elif s > 0:
                masks.append(t_local < L - s)
            else:
                masks.append(None)

        def dilated_conv(act_f32, w_ref, b_ref):
            # Per-tap accumulation: roll (XLU slot) -> edge mask (f32 select,
            # v5e-safe) -> cast at the MXU boundary -> (C, C) @ (C, Lb) matmul,
            # accumulated in f32.  No (K*C, Lb) stacked operand is ever built.
            y = None
            for k, s in enumerate(offsets):
                if s % Lb == 0:
                    tap = act_f32
                else:
                    # roll semantics match jnp.roll: y[t] = x[(t - shift) mod Lb],
                    # so shift = (-s) % Lb gives y[t] = x[(t + s) mod Lb].
                    tap = pltpu.roll(act_f32, shift=(-s) % Lb, axis=1)
                if masks[k] is not None:
                    # Zero positions whose source falls outside [0, L): this
                    # reproduces the conv's zero padding and stops batch
                    # elements packed along the lane axis from leaking.
                    tap = jnp.where(masks[k], tap, 0.0)
                d = jnp.dot(w_ref[k], tap.astype(mxu_dtype),
                            preferred_element_type=jnp.float32)
                y = d if y is None else y + d
            return y + b_ref[...]

        # leaky_relu / bias / residual stay in f32.
        h = dilated_conv(_leaky_relu(x), w1_ref, b1_ref)
        h = dilated_conv(_leaky_relu(h), w2_ref, b2_ref)
        o_ref[...] = (h + x).astype(o_ref.dtype)

    return kernel


def _vmem_limit_bytes():
    """Explicit scoped-VMEM limit: 3/4 of physical (96 MiB on v5e/v6e, 48 MiB on v7x)."""
    try:
        cap = pltpu.get_tpu_info().vmem_capacity_bytes
    except Exception:
        cap = 64 * 1024 * 1024
    return int(cap * 3 // 4)


def resblock_pallas(x, w1, b1, w2, b2, kernel_size, dilation, *,
                    max_block_lanes=2048, mxu_dtype=jnp.bfloat16):
    """x: (N, C, L) float32; w*: (C_out, C_in, K); b*: (C,)."""
    N, C, L = x.shape
    K = kernel_size
    assert (dilation * (K - 1)) % 2 == 0, "odd kernel_size expected ('same' conv)"
    pad = dilation * (K - 1) // 2

    vmem_limit = _vmem_limit_bytes()
    # Lane budget: roughly 10 live (C, lanes) f32 tiles per step (double-
    # buffered in/out blocks + kernel temps) must fit the scoped limit.
    budget_lanes = max(128, (vmem_limit // (40 * C)) // 128 * 128)
    eff_max_lanes = min(max_block_lanes, budget_lanes)

    compiler_params = pltpu.CompilerParams(
        dimension_semantics=("parallel",),
        vmem_limit_bytes=vmem_limit,
    )

    # ---- parameter plumbing (tiny; done once) ----
    # Weights as (K, C_out, C_in) so the kernel picks tap k with a clean
    # leading-axis index; cast once to the MXU dtype.
    w1f = jnp.transpose(w1, (2, 0, 1)).astype(mxu_dtype)
    w2f = jnp.transpose(w2, (2, 0, 1)).astype(mxu_dtype)
    b1c = b1.reshape(C, 1).astype(jnp.float32)
    b2c = b2.reshape(C, 1).astype(jnp.float32)

    weight_specs = [
        pl.BlockSpec((K, C, C), lambda i: (0, 0, 0)),
        pl.BlockSpec((C, 1), lambda i: (0, 0)),
        pl.BlockSpec((K, C, C), lambda i: (0, 0, 0)),
        pl.BlockSpec((C, 1), lambda i: (0, 0)),
    ]
    # TODO(synk): weights never change block index; pipeline_mode=pl.Buffered(1)
    # on these specs would reclaim their second pipeline buffer (v7x headroom).

    use_ncl = (L % 128 == 0) and (L >= 512 or N == 1)
    if use_ncl:
        # NCL-direct path: no wrapper transposes (saves two full HBM round
        # trips), one batch element per grid step, lanes = L (128-aligned),
        # grid = N >= 2 keeps both v7x TensorCores busy for batched input.
        # TODO(synk): production HiFiGAN (C~512, L in the tens of thousands)
        # needs an L-tiled grid axis with a `pad`-column halo (manual
        # pltpu.make_async_copy window) so one block fits v7x's 64 MiB VMEM.
        kernel = _make_resblock_kernel(C, L, K, dilation, pad, 1, mxu_dtype)
        return pl.pallas_call(
            kernel,
            out_shape=jax.ShapeDtypeStruct((N, C, L), x.dtype),
            grid_spec=pltpu.PrefetchScalarGridSpec(
                num_scalar_prefetch=0,
                grid=(N,),
                in_specs=[pl.BlockSpec((None, C, L), lambda i: (i, 0, 0))]  # squeezed batch dim
                         + weight_specs,
                out_specs=pl.BlockSpec((None, C, L), lambda i: (i, 0, 0)),
            ),
            compiler_params=compiler_params,
        )(x, w1f, b1c, w2f, b2c)

    # ---- lane-packing path (tiny L) ----
    # Pack nb batch elements along lanes, but keep >= 2 grid steps when N >= 2
    # (software pipelining + both v7x TensorCores).
    target_steps = 2 if N >= 2 else 1
    nb = 1
    for cand in range(N, 0, -1):
        if N % cand:
            continue
        if cand * L > eff_max_lanes:
            continue
        if N // cand < target_steps:
            continue
        nb = cand
        break
    if L % 128 != 0:
        # Lane block must be 128-aligned or full-extent; fall back to the full
        # slab.  TODO(synk): for large N*L with non-128-multiple L this needs a
        # halo'd L-tiled grid instead of a single full-extent block.
        nb = N
    Lb = nb * L

    # Lane-dense activation slab: (C, N*L) with lane j -> (batch j//L, time j%L).
    x2 = jnp.transpose(x, (1, 0, 2)).reshape(C, N * L)
    kernel = _make_resblock_kernel(C, L, K, dilation, pad, nb, mxu_dtype)
    out2 = pl.pallas_call(
        kernel,
        out_shape=jax.ShapeDtypeStruct((C, N * L), x.dtype),
        grid_spec=pltpu.PrefetchScalarGridSpec(
            num_scalar_prefetch=0,
            grid=(N // nb,),
            in_specs=[pl.BlockSpec((C, Lb), lambda i: (0, i))] + weight_specs,
            out_specs=pl.BlockSpec((C, Lb), lambda i: (0, i)),
        ),
        compiler_params=compiler_params,
    )(x2, w1f, b1c, w2f, b2c)

    # Back to PyTorch's NCL layout.
    return jnp.transpose(out2.reshape(C, N, L), (1, 0, 2))


# ----------------------- pure-JAX reference (for checking) -----------------------
def _conv1d_ref(x, w, b, dilation, pad):
    y = jax.lax.conv_general_dilated(
        x, w,
        window_strides=(1,),
        padding=[(pad, pad)],
        rhs_dilation=(dilation,),
        dimension_numbers=("NCH", "OIH", "NCH"),
    )
    return y + b[None, :, None]


def resblock_ref(x, w1, b1, w2, b2, kernel_size, dilation):
    pad = dilation * (kernel_size - 1) // 2
    residual = x
    h = _leaky_relu(x)
    h = _conv1d_ref(h, w1, b1, dilation, pad)
    h = _leaky_relu(h)
    h = _conv1d_ref(h, w2, b2, dilation, pad)
    return h + residual


# ----------------------- parameter init (deterministic, synthetic) ---------------
def _weight_norm_init(key, shape):
    """Mimic weight_norm(nn.Conv1d).weight: w = g * v / ||v||, norm over (in, k)."""
    kv, kg = jax.random.split(key)
    v = jax.random.normal(kv, shape, jnp.float32) * 0.1
    g = jax.random.uniform(kg, (shape[0], 1, 1), jnp.float32, 0.5, 1.5)
    norm = jnp.sqrt(jnp.sum(v * v, axis=(1, 2), keepdims=True)) + 1e-12
    return g * v / norm


def _run_case(key, N, C, L, kernel_size, dilation):
    kx, k1, k2, kb1, kb2 = jax.random.split(key, 5)
    x = jax.random.normal(kx, (N, C, L), jnp.float32)
    w1 = _weight_norm_init(k1, (C, C, kernel_size))
    w2 = _weight_norm_init(k2, (C, C, kernel_size))
    b1 = jax.random.normal(kb1, (C,), jnp.float32) * 0.1
    b2 = jax.random.normal(kb2, (C,), jnp.float32) * 0.1

    out = resblock_pallas(x, w1, b1, w2, b2, kernel_size, dilation)
    out = jax.block_until_ready(out)
    ref = resblock_ref(x, w1, b1, w2, b2, kernel_size, dilation)
    # bf16 MXU operands (f32 accumulation) -> looser tolerance vs the f32 reference.
    np.testing.assert_allclose(np.asarray(out), np.asarray(ref), rtol=5e-2, atol=5e-2)


if __name__ == "__main__":
    key = jax.random.PRNGKey(0)
    ka, kb = jax.random.split(key)

    # Lane-packing path (tiny L): N=2, C=16, L=128, k=3, dilation=2 -> grid=(2,).
    _run_case(ka, N=2, C=16, L=128, kernel_size=3, dilation=2)
    # NCL-direct path (no wrapper transposes): N=2, C=16, L=512, k=3, dilation=3.
    _run_case(kb, N=2, C=16, L=512, kernel_size=3, dilation=3)

    print("KERNEL_OK")
</pallas_src>

<mosaic_0001>
module attributes {stable_mosaic.version = 11 : i64} {
  func.func @kernel(%arg0: i32, %arg1: memref<16x128xf32, #tpu.memory_space<vmem>>, %arg2: memref<3x16x16xbf16, #tpu.memory_space<vmem>>, %arg3: memref<16x1xf32, #tpu.memory_space<vmem>>, %arg4: memref<3x16x16xbf16, #tpu.memory_space<vmem>>, %arg5: memref<16x1xf32, #tpu.memory_space<vmem>>, %arg6: memref<16x128xf32, #tpu.memory_space<vmem>>) attributes {dimension_semantics = [#tpu.dimension_semantics<parallel>], iteration_bounds = array<i64: 2>, scalar_prefetch = 0 : i64, scratch_operands = 0 : i64, tpu.core_type = #tpu.core_type<tc>, window_params = [{transform_indices = @transform_0, window_bounds = array<i64: 16, 128>}, {pipeline_mode = #tpu.pipeline_mode<synchronous>, transform_indices = @transform_1, window_bounds = array<i64: 3, 16, 16>}, {pipeline_mode = #tpu.pipeline_mode<synchronous>, transform_indices = @transform_2, window_bounds = array<i64: 16, 1>}, {pipeline_mode = #tpu.pipeline_mode<synchronous>, transform_indices = @transform_3, window_bounds = array<i64: 3, 16, 16>}, {pipeline_mode = #tpu.pipeline_mode<synchronous>, transform_indices = @transform_4, window_bounds = array<i64: 16, 1>}, {transform_indices = @transform_5, window_bounds = array<i64: 16, 128>}]} {
    %c0 = arith.constant 0 : index
    %c0_0 = arith.constant 0 : index
    %0 = vector.load %arg1[%c0, %c0_0] : memref<16x128xf32, #tpu.memory_space<vmem>>, vector<16x128xf32>
    %1 = tpu.iota {dimensions = array<i32: 1>} : vector<1x128xi32>
    %c128_i32 = arith.constant 128 : i32
    %c0_i32 = arith.constant 0 : i32
    %2 = arith.cmpi eq, %c128_i32, %c0_i32 : i32
    %c1_i32 = arith.constant 1 : i32
    %3 = arith.select %2, %c1_i32, %c128_i32 : i32
    %4 = vector.broadcast %3 : i32 to vector<1x128xi32>
    %5 = arith.remsi %1, %4 : vector<1x128xi32>
    %c0_i32_1 = arith.constant 0 : i32
    %6 = vector.broadcast %c0_i32_1 : i32 to vector<1x128xi32>
    %7 = arith.cmpi ne, %5, %6 : vector<1x128xi32>
    %c0_i32_2 = arith.constant 0 : i32
    %8 = vector.broadcast %c0_i32_2 : i32 to vector<1x128xi32>
    %9 = arith.cmpi slt, %5, %8 : vector<1x128xi32>
    %c0_i32_3 = arith.constant 0 : i32
    %10 = arith.cmpi slt, %3, %c0_i32_3 : i32
    %11 = vector.broadcast %10 : i1 to vector<1x128xi1>
    %12 = vector.broadcast %11 : vector<1x128xi1> to vector<1x128xi1>
    %13 = arith.xori %9, %12 : vector<1x128xi1>
    %14 = arith.andi %13, %7 : vector<1x128xi1>
    %15 = vector.broadcast %3 : i32 to vector<1x128xi32>
    %16 = arith.addi %5, %15 : vector<1x128xi32>
    %17 = arith.select %14, %16, %5 : vector<1x128xi1>, vector<1x128xi32>
    %c2_i32 = arith.constant 2 : i32
    %18 = vector.broadcast %c2_i32 : i32 to vector<1x128xi32>
    %19 = arith.cmpi sge, %17, %18 : vector<1x128xi32>
    %c126_i32 = arith.constant 126 : i32
    %20 = vector.broadcast %c126_i32 : i32 to vector<1x128xi32>
    %21 = arith.cmpi slt, %17, %20 : vector<1x128xi32>
    %cst = arith.constant 0.000000e+00 : f32
    %22 = vector.broadcast %cst : f32 to vector<16x128xf32>
    %23 = arith.cmpf oge, %0, %22 : vector<16x128xf32>
    %cst_4 = arith.constant 1.000000e-01 : f32
    %24 = vector.broadcast %cst_4 : f32 to vector<16x128xf32>
    %25 = arith.mulf %24, %0 : vector<16x128xf32>
    %26 = arith.select %23, %0, %25 : vector<16x128xi1>, vector<16x128xf32>
    %c2_i32_5 = arith.constant 2 : i32
    %27 = tpu.dynamic_rotate %26 by %c2_i32_5 dim 1 : vector<16x128xf32>, i32 -> vector<16x128xf32>
    %cst_6 = arith.constant 0.000000e+00 : f32
    %28 = vector.shape_cast %19 : vector<1x128xi1> to vector<1x128xi1>
    %29 = vector.broadcast %28 : vector<1x128xi1> to vector<16x128xi1>
    %30 = vector.broadcast %cst_6 : f32 to vector<16x128xf32>
    %31 = arith.select %29, %27, %30 : vector<16x128xi1>, vector<16x128xf32>
    %c0_7 = arith.constant 0 : index
    %c0_8 = arith.constant 0 : index
    %c0_9 = arith.constant 0 : index
    %32 = vector.load %arg2[%c0_7, %c0_8, %c0_9] : memref<3x16x16xbf16, #tpu.memory_space<vmem>>, vector<1x16x16xbf16>
    %33 = vector.shape_cast %32 : vector<1x16x16xbf16> to vector<16x16xbf16>
    %34 = arith.truncf %31 : vector<16x128xf32> to vector<16x128xbf16>
    %cst_10 = arith.constant dense<0.000000e+00> : vector<16x128xf32>
    %35 = tpu.matmul %33, %34, %cst_10 {dimension_numbers = #tpu.dot_dimension_numbers<[1], [0], [0], [1], [0, 0, 1, 1], [], []>} : vector<16x16xbf16>, vector<16x128xbf16>, vector<16x128xf32> -> vector<16x128xf32>
    %c1 = arith.constant 1 : index
    %c0_11 = arith.constant 0 : index
    %c0_12 = arith.constant 0 : index
    %36 = vector.load %arg2[%c1, %c0_11, %c0_12] : memref<3x16x16xbf16, #tpu.memory_space<vmem>>, vector<1x16x16xbf16>
    %37 = vector.shape_cast %36 : vector<1x16x16xbf16> to vector<16x16xbf16>
    %38 = arith.truncf %26 : vector<16x128xf32> to vector<16x128xbf16>
    %cst_13 = arith.constant dense<0.000000e+00> : vector<16x128xf32>
    %39 = tpu.matmul %37, %38, %cst_13 {dimension_numbers = #tpu.dot_dimension_numbers<[1], [0], [0], [1], [0, 0, 1, 1], [], []>} : vector<16x16xbf16>, vector<16x128xbf16>, vector<16x128xf32> -> vector<16x128xf32>
    %40 = arith.addf %35, %39 : vector<16x128xf32>
    %c126_i32_14 = arith.constant 126 : i32
    %41 = tpu.dynamic_rotate %26 by %c126_i32_14 dim 1 : vector<16x128xf32>, i32 -> vector<16x128xf32>
    %cst_15 = arith.constant 0.000000e+00 : f32
    %42 = vector.shape_cast %21 : vector<1x128xi1> to vector<1x128xi1>
    %43 = vector.broadcast %42 : vector<1x128xi1> to vector<16x128xi1>
    %44 = vector.broadcast %cst_15 : f32 to vector<16x128xf32>
    %45 = arith.select %43, %41, %44 : vector<16x128xi1>, vector<16x128xf32>
    %c2 = arith.constant 2 : index
    %c0_16 = arith.constant 0 : index
    %c0_17 = arith.constant 0 : index
    %46 = vector.load %arg2[%c2, %c0_16, %c0_17] : memref<3x16x16xbf16, #tpu.memory_space<vmem>>, vector<1x16x16xbf16>
    %47 = vector.shape_cast %46 : vector<1x16x16xbf16> to vector<16x16xbf16>
    %48 = arith.truncf %45 : vector<16x128xf32> to vector<16x128xbf16>
    %cst_18 = arith.constant dense<0.000000e+00> : vector<16x128xf32>
    %49 = tpu.matmul %47, %48, %cst_18 {dimension_numbers = #tpu.dot_dimension_numbers<[1], [0], [0], [1], [0, 0, 1, 1], [], []>} : vector<16x16xbf16>, vector<16x128xbf16>, vector<16x128xf32> -> vector<16x128xf32>
    %50 = arith.addf %40, %49 : vector<16x128xf32>
    %c0_19 = arith.constant 0 : index
    %c0_20 = arith.constant 0 : index
    %51 = vector.load %arg3[%c0_19, %c0_20] : memref<16x1xf32, #tpu.memory_space<vmem>>, vector<16x1xf32>
    %52 = vector.broadcast %51 : vector<16x1xf32> to vector<16x128xf32>
    %53 = arith.addf %50, %52 : vector<16x128xf32>
    %cst_21 = arith.constant 0.000000e+00 : f32
    %54 = vector.broadcast %cst_21 : f32 to vector<16x128xf32>
    %55 = arith.cmpf oge, %53, %54 : vector<16x128xf32>
    %cst_22 = arith.constant 1.000000e-01 : f32
    %56 = vector.broadcast %cst_22 : f32 to vector<16x128xf32>
    %57 = arith.mulf %56, %53 : vector<16x128xf32>
    %58 = arith.select %55, %53, %57 : vector<16x128xi1>, vector<16x128xf32>
    %c2_i32_23 = arith.constant 2 : i32
    %59 = tpu.dynamic_rotate %58 by %c2_i32_23 dim 1 : vector<16x128xf32>, i32 -> vector<16x128xf32>
    %cst_24 = arith.constant 0.000000e+00 : f32
    %60 = vector.shape_cast %19 : vector<1x128xi1> to vector<1x128xi1>
    %61 = vector.broadcast %60 : vector<1x128xi1> to vector<16x128xi1>
    %62 = vector.broadcast %cst_24 : f32 to vector<16x128xf32>
    %63 = arith.select %61, %59, %62 : vector<16x128xi1>, vector<16x128xf32>
    %c0_25 = arith.constant 0 : index
    %c0_26 = arith.constant 0 : index
    %c0_27 = arith.constant 0 : index
    %64 = vector.load %arg4[%c0_25, %c0_26, %c0_27] : memref<3x16x16xbf16, #tpu.memory_space<vmem>>, vector<1x16x16xbf16>
    %65 = vector.shape_cast %64 : vector<1x16x16xbf16> to vector<16x16xbf16>
    %66 = arith.truncf %63 : vector<16x128xf32> to vector<16x128xbf16>
    %cst_28 = arith.constant dense<0.000000e+00> : vector<16x128xf32>
    %67 = tpu.matmul %65, %66, %cst_28 {dimension_numbers = #tpu.dot_dimension_numbers<[1], [0], [0], [1], [0, 0, 1, 1], [], []>} : vector<16x16xbf16>, vector<16x128xbf16>, vector<16x128xf32> -> vector<16x128xf32>
    %c1_29 = arith.constant 1 : index
    %c0_30 = arith.constant 0 : index
    %c0_31 = arith.constant 0 : index
    %68 = vector.load %arg4[%c1_29, %c0_30, %c0_31] : memref<3x16x16xbf16, #tpu.memory_space<vmem>>, vector<1x16x16xbf16>
    %69 = vector.shape_cast %68 : vector<1x16x16xbf16> to vector<16x16xbf16>
    %70 = arith.truncf %58 : vector<16x128xf32> to vector<16x128xbf16>
    %cst_32 = arith.constant dense<0.000000e+00> : vector<16x128xf32>
    %71 = tpu.matmul %69, %70, %cst_32 {dimension_numbers = #tpu.dot_dimension_numbers<[1], [0], [0], [1], [0, 0, 1, 1], [], []>} : vector<16x16xbf16>, vector<16x128xbf16>, vector<16x128xf32> -> vector<16x128xf32>
    %72 = arith.addf %67, %71 : vector<16x128xf32>
    %c126_i32_33 = arith.constant 126 : i32
    %73 = tpu.dynamic_rotate %58 by %c126_i32_33 dim 1 : vector<16x128xf32>, i32 -> vector<16x128xf32>
    %cst_34 = arith.constant 0.000000e+00 : f32
    %74 = vector.shape_cast %21 : vector<1x128xi1> to vector<1x128xi1>
    %75 = vector.broadcast %74 : vector<1x128xi1> to vector<16x128xi1>
    %76 = vector.broadcast %cst_34 : f32 to vector<16x128xf32>
    %77 = arith.select %75, %73, %76 : vector<16x128xi1>, vector<16x128xf32>
    %c2_35 = arith.constant 2 : index
    %c0_36 = arith.constant 0 : index
    %c0_37 = arith.constant 0 : index
    %78 = vector.load %arg4[%c2_35, %c0_36, %c0_37] : memref<3x16x16xbf16, #tpu.memory_space<vmem>>, vector<1x16x16xbf16>
    %79 = vector.shape_cast %78 : vector<1x16x16xbf16> to vector<16x16xbf16>
    %80 = arith.truncf %77 : vector<16x128xf32> to vector<16x128xbf16>
    %cst_38 = arith.constant dense<0.000000e+00> : vector<16x128xf32>
    %81 = tpu.matmul %79, %80, %cst_38 {dimension_numbers = #tpu.dot_dimension_numbers<[1], [0], [0], [1], [0, 0, 1, 1], [], []>} : vector<16x16xbf16>, vector<16x128xbf16>, vector<16x128xf32> -> vector<16x128xf32>
    %82 = arith.addf %72, %81 : vector<16x128xf32>
    %c0_39 = arith.constant 0 : index
    %c0_40 = arith.constant 0 : index
    %83 = vector.load %arg5[%c0_39, %c0_40] : memref<16x1xf32, #tpu.memory_space<vmem>>, vector<16x1xf32>
    %84 = vector.broadcast %83 : vector<16x1xf32> to vector<16x128xf32>
    %85 = arith.addf %82, %84 : vector<16x128xf32>
    %86 = arith.addf %85, %0 : vector<16x128xf32>
    %c0_41 = arith.constant 0 : index
    %c0_42 = arith.constant 0 : index
    %87 = vector.load %arg6[%c0_41, %c0_42] : memref<16x128xf32, #tpu.memory_space<vmem>>, vector<16x128xf32>
    tpu.vector_store %arg6[%c0_41, %c0_42], %86 {strides = array<i32>} : memref<16x128xf32, #tpu.memory_space<vmem>>, vector<16x128xf32>,
    return
  }
  func.func @transform_0(%arg0: i32) -> (i32, i32) {
    %c0_i32 = arith.constant 0 : i32
    %c0_i32_0 = arith.constant 0 : i32
    return %c0_i32, %arg0 : i32, i32
  }
  func.func @transform_1(%arg0: i32) -> (i32, i32, i32) {
    %c0_i32 = arith.constant 0 : i32
    %c0_i32_0 = arith.constant 0 : i32
    %c0_i32_1 = arith.constant 0 : i32
    %c0_i32_2 = arith.constant 0 : i32
    return %c0_i32, %c0_i32_0, %c0_i32_1 : i32, i32, i32
  }
  func.func @transform_2(%arg0: i32) -> (i32, i32) {
    %c0_i32 = arith.constant 0 : i32
    %c0_i32_0 = arith.constant 0 : i32
    %c0_i32_1 = arith.constant 0 : i32
    return %c0_i32, %c0_i32_0 : i32, i32
  }
  func.func @transform_3(%arg0: i32) -> (i32, i32, i32) {
    %c0_i32 = arith.constant 0 : i32
    %c0_i32_0 = arith.constant 0 : i32
    %c0_i32_1 = arith.constant 0 : i32
    %c0_i32_2 = arith.constant 0 : i32
    return %c0_i32, %c0_i32_0, %c0_i32_1 : i32, i32, i32
  }
  func.func @transform_4(%arg0: i32) -> (i32, i32) {
    %c0_i32 = arith.constant 0 : i32
    %c0_i32_0 = arith.constant 0 : i32
    %c0_i32_1 = arith.constant 0 : i32
    return %c0_i32, %c0_i32_0 : i32, i32
  }
  func.func @transform_5(%arg0: i32) -> (i32, i32) {
    %c0_i32 = arith.constant 0 : i32
    %c0_i32_0 = arith.constant 0 : i32
    return %c0_i32, %arg0 : i32, i32
  }
}

</mosaic_0001>

<llo_original>
// kernel: tpu_custom_call.1
$region0: #{tpu_custom_call.1}
  #allocation0 [shape = 'u32[]', space=smem, size = 0x4, offset = 0x4, fixed_abs, tag = 'smem constant byte address 0x4 - core index']
  #allocation1 [shape = 'u32[144,128]{1,0:T(1,128)}', space=vmem, size = 0x12000, scoped, tag = 'internal scratch']
  %s0 = inlined_call_operand.vmem [shape: f32[16,256], index: 0, kind: input, shape index: {}]
  %s1 = inlined_call_operand.hbm [shape: bf16[3,16,16], index: 1, kind: input, shape index: {}]
  %s2 = inlined_call_operand.vmem [shape: f32[16,1], index: 2, kind: input, shape index: {}]
  %s3 = inlined_call_operand.hbm [shape: bf16[3,16,16], index: 3, kind: input, shape index: {}]
  %s4 = inlined_call_operand.vmem [shape: f32[16,1], index: 4, kind: input, shape index: {}]
  %s5 = inlined_call_operand.hbm [shape: f32[16,256], index: 5, kind: output, shape index: {}]
  %s6 = sld [smem:[#allocation0]]
  $region99: #{tpu_custom_call.1} parent=0
    _
  %s8 = ssub.s32 1, %s6
  %s9 = scalar_select 0, %s8, %s6
  $region1: #{tpu_custom_call.1} parent=0
    #allocation2 [shape = 'u8[16384]{0}', space=vmem, size = 0x4000, scoped, tag = 'input window, operand 0']
    #allocation3 [shape = 'u8[12288]{0}', space=vmem, size = 0x3000, scoped, tag = 'input window, operand 1, single buffered']
    #allocation4 [shape = 's32[2]{0}', space=sflag, size = 0x8, scoped, tag = 'scoped memory for tpu_custom_call.1']
    #allocation5 [shape = 's32[2]{0}', space=sflag, size = 0x8, scoped, tag = 'scoped memory for tpu_custom_call.1']
    #allocation6 [shape = 'u8[12288]{0}', space=vmem, size = 0x3000, scoped, tag = 'input window, operand 3, single buffered']
    #allocation7 [shape = 's32[1]{0}', space=sflag, size = 0x4, scoped, tag = 'scoped memory for tpu_custom_call.1']
    #allocation8 [shape = 'u8[16384]{0}', space=vmem, size = 0x4000, scoped, tag = 'output window, operand 0']
    %10 = vsyncpa [#allocation4], 0
    %11 = vsyncpa [#allocation7], 0
    %12 = vsyncpa [#allocation5], 0
    %s13 = scalar_lea.sflag [#allocation5], 1
    %14 = vsyncpa %s13, 0
    loop: start=0, step=1, limit=4
    $region2: #{tpu_custom_call.1} parent=1 // loop_pre_header
      _
    $region3: #{tpu_custom_call.1} parent=1 // loop_header
      %s16 = sphi 0, %s20
      %p17 = scmp.ge.s32.totalorder %s16, 4
      %s26 = sphi 0, %s28
      %s29 = sphi 0, %s26
      %s30 = sphi 0, %s29
      %s46 = sphi 0, %s30
      %s50 = sphi 0, %s50
      %s52 = sphi 0, %s50
      %s53 = sphi 0, %s52
      %s67 = sphi 0, %s53
      %s71 = sphi 0, %s71
      %s73 = sphi 0, %s71
      %s74 = sphi 0, %s73
      %s88 = sphi 0, %s74
      %s92 = sphi 0, %s92
      %s94 = sphi 0, %s92
      %s95 = sphi 0, %s94
      %s109 = sphi 0, %s95
      %s113 = sphi 0, %s113
      %s115 = sphi 0, %s113
      %s116 = sphi 0, %s115
      %s130 = sphi 0, %s116
      %s136 = sphi 0, %s138
      %s139 = sphi 0, %s136
      %s140 = sphi 0, %s139
      %s156 = sphi 0, %s140
    $region4: #{tpu_custom_call.1} parent=1 // loop_header_branch
      %19 = sbr.rel (%p17) target = $region8
    $region5: #{tpu_custom_call.1} parent=1 // loop_body
      %s21 = ssub.s32 %s16, 1
      %s22 = ssub.s32 %s16, 2
      %s23 = sadd.s32 %s16, 1
      %s24 = ssub.s32 %s16, %s23
      %p25 = scmp.eq.s32.totalorder %s24, 0
      %s27 = sadd.s32 %s26, 1
      %s28 = scalar_select %p25, %s26, %s27
      %p31 = pneg %p25
      %p32 = scmp.eq.s32.totalorder %s16, 1
      %p33 = por %p31, %p32
      %p34 = scmp.ne.s32.totalorder %s26, %s29
      %p35 = scmp.eq.s32.totalorder %s16, 0
      %p36 = por %p34, %p35
      %p37 = scmp.ne.s32.totalorder %s26, %s29
      %p38 = scmp.eq.s32.totalorder %s21, 1
      %p39 = por %p37, %p38
      %p40 = scmp.ne.s32.totalorder %s29, %s30
      %p41 = scmp.eq.s32.totalorder %s21, 0
      %p42 = por %p40, %p41
      %p43 = scmp.ne.s32.totalorder %s29, %s30
      %p44 = scmp.eq.s32.totalorder %s22, 1
      %p45 = por %p43, %p44
      %p47 = scmp.ne.s32.totalorder %s30, %s46
      %p48 = scmp.eq.s32.totalorder %s22, 0
      %p49 = por %p47, %p48
      %s51 = sadd.s32 %s50, 1
      %p54 = scmp.eq.s32.totalorder %s16, 1
      %p55 = scmp.ne.s32.totalorder %s50, %s52
      %p56 = scmp.eq.s32.totalorder %s16, 0
      %p57 = por %p55, %p56
      %p58 = scmp.ne.s32.totalorder %s50, %s52
      %p59 = scmp.eq.s32.totalorder %s21, 1
      %p60 = por %p58, %p59
      %p61 = scmp.ne.s32.totalorder %s52, %s53
      %p62 = scmp.eq.s32.totalorder %s21, 0
      %p63 = por %p61, %p62
      %p64 = scmp.ne.s32.totalorder %s52, %s53
      %p65 = scmp.eq.s32.totalorder %s22, 1
      %p66 = por %p64, %p65
      %p68 = scmp.ne.s32.totalorder %s53, %s67
      %p69 = scmp.eq.s32.totalorder %s22, 0
      %p70 = por %p68, %p69
      %s72 = sadd.s32 %s71, 1
      %p75 = scmp.eq.s32.totalorder %s16, 1
      %p76 = scmp.ne.s32.totalorder %s71, %s73
      %p77 = scmp.eq.s32.totalorder %s16, 0
      %p78 = por %p76, %p77
      %p79 = scmp.ne.s32.totalorder %s71, %s73
      %p80 = scmp.eq.s32.totalorder %s21, 1
      %p81 = por %p79, %p80
      %p82 = scmp.ne.s32.totalorder %s73, %s74
      %p83 = scmp.eq.s32.totalorder %s21, 0
      %p84 = por %p82, %p83
      %p85 = scmp.ne.s32.totalorder %s73, %s74
      %p86 = scmp.eq.s32.totalorder %s22, 1
      %p87 = por %p85, %p86
      %p89 = scmp.ne.s32.totalorder %s74, %s88
      %p90 = scmp.eq.s32.totalorder %s22, 0
      %p91 = por %p89, %p90
      %s93 = sadd.s32 %s92, 1
      %p96 = scmp.eq.s32.totalorder %s16, 1
      %p97 = scmp.ne.s32.totalorder %s92, %s94
      %p98 = scmp.eq.s32.totalorder %s16, 0
      %p99 = por %p97, %p98
      %p100 = scmp.ne.s32.totalorder %s92, %s94
      %p101 = scmp.eq.s32.totalorder %s21, 1
      %p102 = por %p100, %p101
      %p103 = scmp.ne.s32.totalorder %s94, %s95
      %p104 = scmp.eq.s32.totalorder %s21, 0
      %p105 = por %p103, %p104
      %p106 = scmp.ne.s32.totalorder %s94, %s95
      %p107 = scmp.eq.s32.totalorder %s22, 1
      %p108 = por %p106, %p107
      %p110 = scmp.ne.s32.totalorder %s95, %s109
      %p111 = scmp.eq.s32.totalorder %s22, 0
      %p112 = por %p110, %p111
      %s114 = sadd.s32 %s113, 1
      %p117 = scmp.eq.s32.totalorder %s16, 1
      %p118 = scmp.ne.s32.totalorder %s113, %s115
      %p119 = scmp.eq.s32.totalorder %s16, 0
      %p120 = por %p118, %p119
      %p121 = scmp.ne.s32.totalorder %s113, %s115
      %p122 = scmp.eq.s32.totalorder %s21, 1
      %p123 = por %p121, %p122
      %p124 = scmp.ne.s32.totalorder %s115, %s116
      %p125 = scmp.eq.s32.totalorder %s21, 0
      %p126 = por %p124, %p125
      %p127 = scmp.ne.s32.totalorder %s115, %s116
      %p128 = scmp.eq.s32.totalorder %s22, 1
      %p129 = por %p127, %p128
      %p131 = scmp.ne.s32.totalorder %s116, %s130
      %p132 = scmp.eq.s32.totalorder %s22, 0
      %p133 = por %p131, %p132
      %s134 = ssub.s32 %s16, %s23
      %p135 = scmp.eq.s32.totalorder %s134, 0
      %s137 = sadd.s32 %s136, 1
      %s138 = scalar_select %p135, %s136, %s137
      %p141 = pneg %p135
      %p142 = scmp.eq.s32.totalorder %s16, 1
      %p143 = por %p141, %p142
      %p144 = scmp.ne.s32.totalorder %s136, %s139
      %p145 = scmp.eq.s32.totalorder %s16, 0
      %p146 = por %p144, %p145
      %p147 = scmp.ne.s32.totalorder %s136, %s139
      %p148 = scmp.eq.s32.totalorder %s21, 1
      %p149 = por %p147, %p148
      %p150 = scmp.ne.s32.totalorder %s139, %s140
      %p151 = scmp.eq.s32.totalorder %s21, 0
      %p152 = por %p150, %p151
      %p153 = scmp.ne.s32.totalorder %s139, %s140
      %p154 = scmp.eq.s32.totalorder %s22, 1
      %p155 = por %p153, %p154
      %p157 = scmp.ne.s32.totalorder %s140, %s156
      %p158 = scmp.eq.s32.totalorder %s22, 0
      %p159 = por %p157, %p158
      %p160 = scmp.le.s32.totalorder 1, %s16
      %p161 = scmp.lt.s32.totalorder %s16, 3
      %p162 = pnand %p160, %p161
      %p163 = pneg %p162
      // Predicated region
      $region9: #{tpu_custom_call.1} parent=5 // pred_check
        _
      $region10: #{tpu_custom_call.1} parent=5 // pred_check_branch
        %165 = sbr.rel (%p162) target = $region12
      $region11: #{tpu_custom_call.1} parent=5 // pred_region
        %s166 = ssub.s32 %s16, 1
        // Predicated region
        $region13: #{tpu_custom_call.1} parent=11 // pred_check
          %p167 = pneg %p63
        $region14: #{tpu_custom_call.1} parent=11 // pred_check_branch
          %169 = sbr.rel (%p167) target = $region16
        $region15: #{tpu_custom_call.1} parent=11 // pred_region
          %s171 = ssub.s32 384, 384
          %172 = vsyncadd [#allocation4], %s171
          %s173 = sshll.u32 [#allocation3], 4
          %s174 = int_to_ptr.vmem [resolvable:$true] %s173
          %179 = dma.hbm_to_vmem [thread:$0]  %s1, 384, %s174, [#allocation4], 64, 64, 4
        $region16: #{tpu_custom_call.1} parent=11 // pred_fallthru
          _
        // Predicated region
        $region17: #{tpu_custom_call.1} parent=11 // pred_check
          %p180 = pneg %p84
        $region18: #{tpu_custom_call.1} parent=11 // pred_check_branch
          %182 = sbr.rel (%p180) target = $region20
        $region19: #{tpu_custom_call.1} parent=11 // pred_region
          _
        $region20: #{tpu_custom_call.1} parent=11 // pred_fallthru
          _
        // Predicated region
        $region21: #{tpu_custom_call.1} parent=11 // pred_check
          %p183 = pneg %p105
        $region22: #{tpu_custom_call.1} parent=11 // pred_check_branch
          %185 = sbr.rel (%p183) target = $region24
        $region23: #{tpu_custom_call.1} parent=11 // pred_region
          %s187 = ssub.s32 384, 384
          %188 = vsyncadd [#allocation7], %s187
          %s189 = sshll.u32 [#allocation6], 4
          %s190 = int_to_ptr.vmem [resolvable:$true] %s189
          %195 = dma.hbm_to_vmem [thread:$0]  %s3, 384, %s190, [#allocation7], 64, 64, 4
        $region24: #{tpu_custom_call.1} parent=11 // pred_fallthru
          _
        // Predicated region
        $region25: #{tpu_custom_call.1} parent=11 // pred_check
          %p196 = pneg %p126
        $region26: #{tpu_custom_call.1} parent=11 // pred_check_branch
          %198 = sbr.rel (%p196) target = $region28
        $region27: #{tpu_custom_call.1} parent=11 // pred_region
          _
        $region28: #{tpu_custom_call.1} parent=11 // pred_fallthru
          _
      $region12: #{tpu_custom_call.1} parent=5 // pred_fallthru
        _
      %p199 = scmp.lt.s32.totalorder %s16, 2
      // Predicated region
      $region29: #{tpu_custom_call.1} parent=5 // pred_check
        %p200 = pneg %p199
      $region30: #{tpu_custom_call.1} parent=5 // pred_check_branch
        %202 = sbr.rel (%p200) target = $region32
      $region31: #{tpu_custom_call.1} parent=5 // pred_region
        // Predicated region
        $region33: #{tpu_custom_call.1} parent=31 // pred_check
          %p203 = pneg %p36
        $region34: #{tpu_custom_call.1} parent=31 // pred_check_branch
          %205 = sbr.rel (%p203) target = $region36
        $region35: #{tpu_custom_call.1} parent=31 // pred_region
          %s206 = sand.u32 %s26, 1
          %s207 = sand.u32 %s26, 1
          %s208 = smul.addr %s207, 16
          %s209 = scalar_lea.vmem [#allocation2], %s208
          %s210 = smul.addr %s16, 8
          %s211 = scalar_lea.vmem %s0, %s210
          // Predicated region
          $region37: #{tpu_custom_call.1} parent=35 // pred_check
            _
          $region38: #{tpu_custom_call.1} parent=35 // pred_check_branch
            %213 = sbr.rel (0) target = $region40
          $region39: #{tpu_custom_call.1} parent=35 // pred_region
            // Predicated region
            $region41: #{tpu_custom_call.1} parent=39 // pred_check
              _
            $region42: #{tpu_custom_call.1} parent=39 // pred_check_branch
              %215 = sbr.rel (0) target = $region44
            $region43: #{tpu_custom_call.1} parent=39 // pred_region
              // Predicated region
              $region56: #{tpu_custom_call.1} parent=43 // pred_check
                _
              $region57: #{tpu_custom_call.1} parent=43 // pred_check_branch
                %232 = sbr.rel (0) target = $region59
              $region58: #{tpu_custom_call.1} parent=43 // pred_region
                loop: start=0, step=1, limit=1
                $region60: #{tpu_custom_call.1} parent=58 // loop_pre_header
                  _
                $region61: #{tpu_custom_call.1} parent=58 // loop_header
                  %s234 = sphi 0, %s238
                  %p235 = scmp.ge.s32.totalorder %s234, 1
                  %s239 = sphi %s211, %s211
                  %s240 = sphi %s209, %s209
                $region62: #{tpu_custom_call.1} parent=58 // loop_header_branch
                  %237 = sbr.rel (%p235) target = $region66
                $region63: #{tpu_custom_call.1} parent=58 // loop_body
                  %v241 = vld [vmem:[%s239] sm:$0xff]
                  %242 = vst [vmem:[%s240] sm:$0xff] %v241
                  %v243 = vld [vmem:[%s239 + $0x10] sm:$0xff]
                  %244 = vst [vmem:[%s240 + $0x8] sm:$0xff] %v243
                $region64: #{tpu_custom_call.1} parent=58 // loop_footer
                  %s238 = sadd.s32 1, %s234
                $region65: #{tpu_custom_call.1} parent=58 // loop_footer_branch
                  %233 = sbr.rel target = $region61
                $region66: #{tpu_custom_call.1} parent=58 // loop_exit
                  _
              $region59: #{tpu_custom_call.1} parent=43 // pred_fallthru
                _
              // Predicated region
              $region67: #{tpu_custom_call.1} parent=43 // pred_check
                _
              $region68: #{tpu_custom_call.1} parent=43 // pred_check_branch
                %246 = sbr.rel target = $region70
              $region69: #{tpu_custom_call.1} parent=43 // pred_region
                _
              $region70: #{tpu_custom_call.1} parent=43 // pred_fallthru
                _
            $region44: #{tpu_custom_call.1} parent=39 // pred_fallthru
              _
            // Predicated region
            $region45: #{tpu_custom_call.1} parent=39 // pred_check
              _
            $region46: #{tpu_custom_call.1} parent=39 // pred_check_branch
              %217 = sbr.rel target = $region48
            $region47: #{tpu_custom_call.1} parent=39 // pred_region
              loop: start=0, step=1, limit=1
              $region49: #{tpu_custom_call.1} parent=47 // loop_pre_header
                _
              $region50: #{tpu_custom_call.1} parent=47 // loop_header
                %s220 = sphi 0, %s224
                %p221 = scmp.ge.s32.totalorder %s220, 1
                %s225 = sphi %s211, %s211
                %s226 = sphi %s209, %s209
              $region51: #{tpu_custom_call.1} parent=47 // loop_header_branch
                %223 = sbr.rel (%p221) target = $region55
              $region52: #{tpu_custom_call.1} parent=47 // loop_body
                %v227 = vld [vmem:[%s225] sm:$0xff]
                %228 = vst [vmem:[%s226] sm:$0xff] %v227
                %v229 = vld [vmem:[%s225 + $0x10] sm:$0xff]
                %230 = vst [vmem:[%s226 + $0x8] sm:$0xff] %v229
              $region53: #{tpu_custom_call.1} parent=47 // loop_footer
                %s224 = sadd.s32 1, %s220
              $region54: #{tpu_custom_call.1} parent=47 // loop_footer_branch
                %219 = sbr.rel target = $region50
              $region55: #{tpu_custom_call.1} parent=47 // loop_exit
                _
            $region48: #{tpu_custom_call.1} parent=39 // pred_fallthru
              _
          $region40: #{tpu_custom_call.1} parent=35 // pred_fallthru
            _
          %247 = vnop
        $region36: #{tpu_custom_call.1} parent=31 // pred_fallthru
          _
      $region32: #{tpu_custom_call.1} parent=5 // pred_fallthru
        _
      %p248 = scmp.le.s32.totalorder 1, %s16
      %p249 = scmp.lt.s32.totalorder %s16, 3
      %p250 = pnand %p248, %p249
      %p251 = pneg %p250
      // Predicated region
      $region71: #{tpu_custom_call.1} parent=5 // pred_check
        _
      $region72: #{tpu_custom_call.1} parent=5 // pred_check_branch
        %253 = sbr.rel (%p250) target = $region74
      $region73: #{tpu_custom_call.1} parent=5 // pred_region
        %s254 = ssub.s32 %s16, 1
        %s255 = sand.u32 %s29, 1
        %s256 = sand.u32 %s29, 1
        %s257 = smul.addr %s256, 16
        %s258 = scalar_lea.vmem [#allocation2], %s257
        // Predicated region
        $region75: #{tpu_custom_call.1} parent=73 // pred_check
          %p259 = pneg %p42
        $region76: #{tpu_custom_call.1} parent=73 // pred_check_branch
          %261 = sbr.rel (%p259) target = $region78
        $region77: #{tpu_custom_call.1} parent=73 // pred_region
          _
        $region78: #{tpu_custom_call.1} parent=73 // pred_fallthru
          _
        // Predicated region
        $region79: #{tpu_custom_call.1} parent=73 // pred_check
          %p262 = pneg %p63
        $region80: #{tpu_custom_call.1} parent=73 // pred_check_branch
          %264 = sbr.rel (%p262) target = $region82
        $region81: #{tpu_custom_call.1} parent=73 // pred_region
          %265 = dma.done [#allocation4], 384
        $region82: #{tpu_custom_call.1} parent=73 // pred_fallthru
          _
        // Predicated region
        $region83: #{tpu_custom_call.1} parent=73 // pred_check
          %p266 = pneg %p105
        $region84: #{tpu_custom_call.1} parent=73 // pred_check_branch
          %268 = sbr.rel (%p266) target = $region86
        $region85: #{tpu_custom_call.1} parent=73 // pred_region
          %269 = dma.done [#allocation7], 384
        $region86: #{tpu_custom_call.1} parent=73 // pred_fallthru
          _
        %s270 = sand.u32 %s29, 1
        %s271 = sand.u32 %s29, 1
        %s272 = smul.addr %s271, 16
        %s273 = scalar_lea.vmem [#allocation2], %s272
        %p274 = pneg %p42
        %p275 = pneg %p39
        %p276 = pneg %p63
        %p277 = pneg %p60
        %p278 = pneg %p84
        %p279 = pneg %p81
        %p280 = pneg %p105
        %p281 = pneg %p102
        %p282 = pneg %p126
        %p283 = pneg %p123
        %p284 = pneg %p152
        %p285 = pneg %p149
        %s286 = sand.u32 %s139, 1
        %s287 = scalar_lea.sflag [#allocation5], %s286
        %s288 = sand.u32 %s139, 1
        %s289 = smul.addr %s288, 16
        %s290 = scalar_lea.vmem [#allocation8], %s289
        %v292 = vld [vmem:[%s258] sm:$0xff]
        %v293 = vld [vmem:[%s258 + $0x8] sm:$0xff]
        %v294 = vlaneseq
        %v295 = vand.u32 %v294, 127
        %vm296 = vcmp.lt.s32.totalorder %v295, 0
        %v297 = vsub.s32 0, %v295
        %v298 = vsel %vm296, %v297, %v295
        %v299 = vshrl.u32 %v298, 7
        %v300 = vand.u32 %v298, 127
        %v301 = vsub.s32 0, %v300
        %v302 = vsel %vm296, %v301, %v300
        %vm303 = vcmp.ne.s32.totalorder %v302, 0
        %vm304 = vcmp.lt.s32.totalorder %v302, 0
        %vm305 = vmand %vm304, %vm303
        %v306 = vadd.s32 %v302, 128
        %v307 = vsel %vm305, %v306, %v302
        %vm308 = vcmp.ge.s32.totalorder %v307, 2
        %vm309 = vcmp.lt.s32.totalorder %v307, 126
        %vm310 = vcmp.ge.f32.partialorder %v292, 0.0
        %vm311 = vcmp.ge.f32.partialorder %v293, 0.0
        %v312 = vmul.f32 %v292, 0.1
        %v313 = vmul.f32 %v293, 0.1
        %v314 = vsel %vm310, %v292, %v312
        %v315 = vsel %vm311, %v293, %v313
        %316 = vrot.lane.b32.xlu0 %v314, 2
        %v317 = vpop.permute.xlu0 %316
        %318 = vrot.lane.b32.xlu0 %v315, 2
        %v319 = vpop.permute.xlu0 %318
        %v320 = vsel %vm308, 1, 0
        %vm321 = vcmp.eq.s32.totalorder %v320, 1
        %v322 = vsel %vm321, %v317, 0.0
        %v323 = vsel %vm321, %v319, 0.0
        %v324 = vld [vmem:[#allocation3] sm:$0xf]
        %v325 = vld [vmem:[#allocation3 + $0x4] sm:$0xf]
        %v326 = vpack.c.bf16 %v323, %v322
        %s327 = scalar_lea.vmem [#allocation3], 8
        %v328 = vld [vmem:[%s327] sm:$0xf]
        %v329 = vld [vmem:[%s327 + $0x4] sm:$0xf]
        %v330 = vpack.c.bf16 %v315, %v314
        %v333 = vunpack.c.l.b16 %v328
        %v334 = vunpack.c.l.b16 %v329
        %v335 = vpack.c.b16 %v334, %v333
        %vm336 = vcmask 130048
        %v338 = vsel %vm336, %v335, 0
        %340 = vmatprep.subr.bf16.mxu0 0
        %341 = vmatpush1.bf16.msra.mxu0 %v330
        %342 = vmatprep.subr.bf16.mxu0 0
        %343 = vmatpush1.bf16.msra.mxu0 0
        %344 = vmatprep.subr.bf16.mxu0 0
        %345 = vmatpush1.bf16.msra.mxu0 0
        %346 = vmatprep.subr.bf16.mxu0 0
        %347 = vmatpush1.bf16.msra.mxu0 0
        %348 = vmatprep.subr.bf16.mxu0 0
        %349 = vmatpush1.bf16.msra.mxu0 0
        %350 = vmatprep.subr.bf16.mxu0 0
        %351 = vmatpush1.bf16.msra.mxu0 0
        %352 = vmatprep.subr.bf16.mxu0 0
        %353 = vmatpush1.bf16.msra.mxu0 0
        %354 = vmatprep.subr.bf16.mxu0 0
        %355 = vmatpush1.bf16.msra.mxu0 0
        %356 = vmatprep.subr.bf16.mxu0 0
        %357 = vmatpush1.bf16.msra.mxu0 0
        %358 = vmatprep.subr.bf16.mxu0 0
        %359 = vmatpush1.bf16.msra.mxu0 0
        %360 = vmatprep.subr.bf16.mxu0 0
        %361 = vmatpush1.bf16.msra.mxu0 0
        %362 = vmatprep.subr.bf16.mxu0 0
        %363 = vmatpush1.bf16.msra.mxu0 0
        %364 = vmatprep.subr.bf16.mxu0 0
        %365 = vmatpush1.bf16.msra.mxu0 0
        %366 = vmatprep.subr.bf16.mxu0 0
        %367 = vmatpush1.bf16.msra.mxu0 0
        %368 = vmatprep.subr.bf16.mxu0 0
        %369 = vmatpush1.bf16.msra.mxu0 0
        %370 = vmatprep.subr.bf16.mxu0 0
        %371 = vmatpush1.bf16.msra.mxu0 0
        %372 = vmatprep.mubr.bf16.mxu0 0
        %373 = vmatmul.mubr.bf16.gmra.mrb[0].mxu0 %v338
        %v374 = vpop.f32.mrb[0].mxu0
        %v375 = vadd.f32 0.0, %v374
        %v376 = vpop.f32.mrb[0].mxu0
        %v377 = vpop.f32.mrb[0].mxu0
        %v378 = vadd.f32 0.0, %v377
        %v379 = vpop.f32.mrb[0].mxu0
        %380 = vdwg.mxu0
        %v383 = vunpack.c.l.b16 %v324
        %v384 = vunpack.c.l.b16 %v325
        %v385 = vpack.c.b16 %v384, %v383
        %v387 = vsel %vm336, %v385, 0
        %389 = vmatprep.subr.bf16.mxu0 0
        %390 = vmatpush1.bf16.msra.mxu0 %v326
        %391 = vmatprep.subr.bf16.mxu0 0
        %392 = vmatpush1.bf16.msra.mxu0 0
        %393 = vmatprep.subr.bf16.mxu0 0
        %394 = vmatpush1.bf16.msra.mxu0 0
        %395 = vmatprep.subr.bf16.mxu0 0
        %396 = vmatpush1.bf16.msra.mxu0 0
        %397 = vmatprep.subr.bf16.mxu0 0
        %398 = vmatpush1.bf16.msra.mxu0 0
        %399 = vmatprep.subr.bf16.mxu0 0
        %400 = vmatpush1.bf16.msra.mxu0 0
        %401 = vmatprep.subr.bf16.mxu0 0
        %402 = vmatpush1.bf16.msra.mxu0 0
        %403 = vmatprep.subr.bf16.mxu0 0
        %404 = vmatpush1.bf16.msra.mxu0 0
        %405 = vmatprep.subr.bf16.mxu0 0
        %406 = vmatpush1.bf16.msra.mxu0 0
        %407 = vmatprep.subr.bf16.mxu0 0
        %408 = vmatpush1.bf16.msra.mxu0 0
        %409 = vmatprep.subr.bf16.mxu0 0
        %410 = vmatpush1.bf16.msra.mxu0 0
        %411 = vmatprep.subr.bf16.mxu0 0
        %412 = vmatpush1.bf16.msra.mxu0 0
        %413 = vmatprep.subr.bf16.mxu0 0
        %414 = vmatpush1.bf16.msra.mxu0 0
        %415 = vmatprep.subr.bf16.mxu0 0
        %416 = vmatpush1.bf16.msra.mxu0 0
        %417 = vmatprep.subr.bf16.mxu0 0
        %418 = vmatpush1.bf16.msra.mxu0 0
        %419 = vmatprep.subr.bf16.mxu0 0
        %420 = vmatpush1.bf16.msra.mxu0 0
        %421 = vmatprep.mubr.bf16.mxu0 0
        %422 = vmatmul.mubr.bf16.gmra.mrb[0].mxu0 %v387
        %v423 = vpop.f32.mrb[0].mxu0
        %v424 = vadd.f32 %v375, %v423
        %v425 = vpop.f32.mrb[0].mxu0
        %v426 = vpop.f32.mrb[0].mxu0
        %v427 = vadd.f32 %v378, %v426
        %v428 = vpop.f32.mrb[0].mxu0
        %429 = vdwg.mxu0
        %430 = vrot.lane.b32.xlu0 %v314, 126
        %v431 = vpop.permute.xlu0 %430
        %432 = vrot.lane.b32.xlu0 %v315, 126
        %v433 = vpop.permute.xlu0 %432
        %v434 = vsel %vm309, 1, 0
        %vm435 = vcmp.eq.s32.totalorder %v434, 1
        %v436 = vsel %vm435, %v431, 0.0
        %v437 = vsel %vm435, %v433, 0.0
        %s438 = scalar_lea.vmem [#allocation3], 16
        %v439 = vld [vmem:[%s438] sm:$0xf]
        %v440 = vld [vmem:[%s438 + $0x4] sm:$0xf]
        %v441 = vpack.c.bf16 %v437, %v436
        %v444 = vunpack.c.l.b16 %v439
        %v445 = vunpack.c.l.b16 %v440
        %v446 = vpack.c.b16 %v445, %v444
        %v448 = vsel %vm336, %v446, 0
        %450 = vmatprep.subr.bf16.mxu0 0
        %451 = vmatpush1.bf16.msra.mxu0 %v441
        %452 = vmatprep.subr.bf16.mxu0 0
        %453 = vmatpush1.bf16.msra.mxu0 0
        %454 = vmatprep.subr.bf16.mxu0 0
        %455 = vmatpush1.bf16.msra.mxu0 0
        %456 = vmatprep.subr.bf16.mxu0 0
        %457 = vmatpush1.bf16.msra.mxu0 0
        %458 = vmatprep.subr.bf16.mxu0 0
        %459 = vmatpush1.bf16.msra.mxu0 0
        %460 = vmatprep.subr.bf16.mxu0 0
        %461 = vmatpush1.bf16.msra.mxu0 0
        %462 = vmatprep.subr.bf16.mxu0 0
        %463 = vmatpush1.bf16.msra.mxu0 0
        %464 = vmatprep.subr.bf16.mxu0 0
        %465 = vmatpush1.bf16.msra.mxu0 0
        %466 = vmatprep.subr.bf16.mxu0 0
        %467 = vmatpush1.bf16.msra.mxu0 0
        %468 = vmatprep.subr.bf16.mxu0 0
        %469 = vmatpush1.bf16.msra.mxu0 0
        %470 = vmatprep.subr.bf16.mxu0 0
        %471 = vmatpush1.bf16.msra.mxu0 0
        %472 = vmatprep.subr.bf16.mxu0 0
        %473 = vmatpush1.bf16.msra.mxu0 0
        %474 = vmatprep.subr.bf16.mxu0 0
        %475 = vmatpush1.bf16.msra.mxu0 0
        %476 = vmatprep.subr.bf16.mxu0 0
        %477 = vmatpush1.bf16.msra.mxu0 0
        %478 = vmatprep.subr.bf16.mxu0 0
        %479 = vmatpush1.bf16.msra.mxu0 0
        %480 = vmatprep.subr.bf16.mxu0 0
        %481 = vmatpush1.bf16.msra.mxu0 0
        %482 = vmatprep.mubr.bf16.mxu0 0
        %483 = vmatmul.mubr.bf16.gmra.mrb[0].mxu0 %v448
        %v484 = vpop.f32.mrb[0].mxu0
        %v485 = vadd.f32 0.0, %v484
        %v486 = vpop.f32.mrb[0].mxu0
        %v487 = vpop.f32.mrb[0].mxu0
        %v488 = vadd.f32 0.0, %v487
        %v489 = vpop.f32.mrb[0].mxu0
        %490 = vdwg.mxu0
        %v491 = vadd.f32 %v424, %v485
        %v492 = vadd.f32 %v427, %v488
        %v493 = vld [vmem:[%s2] sm:$0xff]
        %v494 = vld [vmem:[%s2 + $0x8] sm:$0xff]
        %496 = vset.pattern.permute.xlu0 0
        %497 = vperm.xlu0 %496, %v493
        %v498 = vpop.permute.xlu0 %497
        %501 = vset.pattern.permute.xlu0 0
        %502 = vperm.xlu0 %501, %v494
        %v503 = vpop.permute.xlu0 %502
        %v505 = vadd.f32 %v491, %v498
        %v506 = vadd.f32 %v492, %v503
        %vm507 = vcmp.ge.f32.partialorder %v505, 0.0
        %vm508 = vcmp.ge.f32.partialorder %v506, 0.0
        %v509 = vmul.f32 %v505, 0.1
        %v510 = vmul.f32 %v506, 0.1
        %v511 = vsel %vm507, %v505, %v509
        %v512 = vsel %vm508, %v506, %v510
        %513 = vrot.lane.b32.xlu0 %v511, 2
        %v514 = vpop.permute.xlu0 %513
        %515 = vrot.lane.b32.xlu0 %v512, 2
        %v516 = vpop.permute.xlu0 %515
        %v517 = vsel %vm321, %v514, 0.0
        %v518 = vsel %vm321, %v516, 0.0
        %v519 = vld [vmem:[#allocation6] sm:$0xf]
        %v520 = vld [vmem:[#allocation6 + $0x4] sm:$0xf]
        %v521 = vpack.c.bf16 %v518, %v517
        %s522 = scalar_lea.vmem [#allocation6], 8
        %v523 = vld [vmem:[%s522] sm:$0xf]
        %v524 = vld [vmem:[%s522 + $0x4] sm:$0xf]
        %v525 = vpack.c.bf16 %v512, %v511
        %v528 = vunpack.c.l.b16 %v523
        %v529 = vunpack.c.l.b16 %v524
        %v530 = vpack.c.b16 %v529, %v528
        %v532 = vsel %vm336, %v530, 0
        %534 = vmatprep.subr.bf16.mxu0 0
        %535 = vmatpush1.bf16.msra.mxu0 %v525
        %536 = vmatprep.subr.bf16.mxu0 0
        %537 = vmatpush1.bf16.msra.mxu0 0
        %538 = vmatprep.subr.bf16.mxu0 0
        %539 = vmatpush1.bf16.msra.mxu0 0
        %540 = vmatprep.subr.bf16.mxu0 0
        %541 = vmatpush1.bf16.msra.mxu0 0
        %542 = vmatprep.subr.bf16.mxu0 0
        %543 = vmatpush1.bf16.msra.mxu0 0
        %544 = vmatprep.subr.bf16.mxu0 0
        %545 = vmatpush1.bf16.msra.mxu0 0
        %546 = vmatprep.subr.bf16.mxu0 0
        %547 = vmatpush1.bf16.msra.mxu0 0
        %548 = vmatprep.subr.bf16.mxu0 0
        %549 = vmatpush1.bf16.msra.mxu0 0
        %550 = vmatprep.subr.bf16.mxu0 0
        %551 = vmatpush1.bf16.msra.mxu0 0
        %552 = vmatprep.subr.bf16.mxu0 0
        %553 = vmatpush1.bf16.msra.mxu0 0
        %554 = vmatprep.subr.bf16.mxu0 0
        %555 = vmatpush1.bf16.msra.mxu0 0
        %556 = vmatprep.subr.bf16.mxu0 0
        %557 = vmatpush1.bf16.msra.mxu0 0
        %558 = vmatprep.subr.bf16.mxu0 0
        %559 = vmatpush1.bf16.msra.mxu0 0
        %560 = vmatprep.subr.bf16.mxu0 0
        %561 = vmatpush1.bf16.msra.mxu0 0
        %562 = vmatprep.subr.bf16.mxu0 0
        %563 = vmatpush1.bf16.msra.mxu0 0
        %564 = vmatprep.subr.bf16.mxu0 0
        %565 = vmatpush1.bf16.msra.mxu0 0
        %566 = vmatprep.mubr.bf16.mxu0 0
        %567 = vmatmul.mubr.bf16.gmra.mrb[0].mxu0 %v532
        %v568 = vpop.f32.mrb[0].mxu0
        %v569 = vadd.f32 0.0, %v568
        %v570 = vpop.f32.mrb[0].mxu0
        %v571 = vpop.f32.mrb[0].mxu0
        %v572 = vadd.f32 0.0, %v571
        %v573 = vpop.f32.mrb[0].mxu0
        %574 = vdwg.mxu0
        %v577 = vunpack.c.l.b16 %v519
        %v578 = vunpack.c.l.b16 %v520
        %v579 = vpack.c.b16 %v578, %v577
        %v581 = vsel %vm336, %v579, 0
        %583 = vmatprep.subr.bf16.mxu0 0
        %584 = vmatpush1.bf16.msra.mxu0 %v521
        %585 = vmatprep.subr.bf16.mxu0 0
        %586 = vmatpush1.bf16.msra.mxu0 0
        %587 = vmatprep.subr.bf16.mxu0 0
        %588 = vmatpush1.bf16.msra.mxu0 0
        %589 = vmatprep.subr.bf16.mxu0 0
        %590 = vmatpush1.bf16.msra.mxu0 0
        %591 = vmatprep.subr.bf16.mxu0 0
        %592 = vmatpush1.bf16.msra.mxu0 0
        %593 = vmatprep.subr.bf16.mxu0 0
        %594 = vmatpush1.bf16.msra.mxu0 0
        %595 = vmatprep.subr.bf16.mxu0 0
        %596 = vmatpush1.bf16.msra.mxu0 0
        %597 = vmatprep.subr.bf16.mxu0 0
        %598 = vmatpush1.bf16.msra.mxu0 0
        %599 = vmatprep.subr.bf16.mxu0 0
        %600 = vmatpush1.bf16.msra.mxu0 0
        %601 = vmatprep.subr.bf16.mxu0 0
        %602 = vmatpush1.bf16.msra.mxu0 0
        %603 = vmatprep.subr.bf16.mxu0 0
        %604 = vmatpush1.bf16.msra.mxu0 0
        %605 = vmatprep.subr.bf16.mxu0 0
        %606 = vmatpush1.bf16.msra.mxu0 0
        %607 = vmatprep.subr.bf16.mxu0 0
        %608 = vmatpush1.bf16.msra.mxu0 0
        %609 = vmatprep.subr.bf16.mxu0 0
        %610 = vmatpush1.bf16.msra.mxu0 0
        %611 = vmatprep.subr.bf16.mxu0 0
        %612 = vmatpush1.bf16.msra.mxu0 0
        %613 = vmatprep.subr.bf16.mxu0 0
        %614 = vmatpush1.bf16.msra.mxu0 0
        %615 = vmatprep.mubr.bf16.mxu0 0
        %616 = vmatmul.mubr.bf16.gmra.mrb[0].mxu0 %v581
        %v617 = vpop.f32.mrb[0].mxu0
        %v618 = vadd.f32 %v569, %v617
        %v619 = vpop.f32.mrb[0].mxu0
        %v620 = vpop.f32.mrb[0].mxu0
        %v621 = vadd.f32 %v572, %v620
        %v622 = vpop.f32.mrb[0].mxu0
        %623 = vdwg.mxu0
        %624 = vrot.lane.b32.xlu0 %v511, 126
        %v625 = vpop.permute.xlu0 %624
        %626 = vrot.lane.b32.xlu0 %v512, 126
        %v627 = vpop.permute.xlu0 %626
        %v628 = vsel %vm435, %v625, 0.0
        %v629 = vsel %vm435, %v627, 0.0
        %s630 = scalar_lea.vmem [#allocation6], 16
        %v631 = vld [vmem:[%s630] sm:$0xf]
        %v632 = vld [vmem:[%s630 + $0x4] sm:$0xf]
        %v633 = vpack.c.bf16 %v629, %v628
        %v636 = vunpack.c.l.b16 %v631
        %v637 = vunpack.c.l.b16 %v632
        %v638 = vpack.c.b16 %v637, %v636
        %v640 = vsel %vm336, %v638, 0
        %642 = vmatprep.subr.bf16.mxu0 0
        %643 = vmatpush1.bf16.msra.mxu0 %v633
        %644 = vmatprep.subr.bf16.mxu0 0
        %645 = vmatpush1.bf16.msra.mxu0 0
        %646 = vmatprep.subr.bf16.mxu0 0
        %647 = vmatpush1.bf16.msra.mxu0 0
        %648 = vmatprep.subr.bf16.mxu0 0
        %649 = vmatpush1.bf16.msra.mxu0 0
        %650 = vmatprep.subr.bf16.mxu0 0
        %651 = vmatpush1.bf16.msra.mxu0 0
        %652 = vmatprep.subr.bf16.mxu0 0
        %653 = vmatpush1.bf16.msra.mxu0 0
        %654 = vmatprep.subr.bf16.mxu0 0
        %655 = vmatpush1.bf16.msra.mxu0 0
        %656 = vmatprep.subr.bf16.mxu0 0
        %657 = vmatpush1.bf16.msra.mxu0 0
        %658 = vmatprep.subr.bf16.mxu0 0
        %659 = vmatpush1.bf16.msra.mxu0 0
        %660 = vmatprep.subr.bf16.mxu0 0
        %661 = vmatpush1.bf16.msra.mxu0 0
        %662 = vmatprep.subr.bf16.mxu0 0
        %663 = vmatpush1.bf16.msra.mxu0 0
        %664 = vmatprep.subr.bf16.mxu0 0
        %665 = vmatpush1.bf16.msra.mxu0 0
        %666 = vmatprep.subr.bf16.mxu0 0
        %667 = vmatpush1.bf16.msra.mxu0 0
        %668 = vmatprep.subr.bf16.mxu0 0
        %669 = vmatpush1.bf16.msra.mxu0 0
        %670 = vmatprep.subr.bf16.mxu0 0
        %671 = vmatpush1.bf16.msra.mxu0 0
        %672 = vmatprep.subr.bf16.mxu0 0
        %673 = vmatpush1.bf16.msra.mxu0 0
        %674 = vmatprep.mubr.bf16.mxu0 0
        %675 = vmatmul.mubr.bf16.gmra.mrb[0].mxu0 %v640
        %v676 = vpop.f32.mrb[0].mxu0
        %v677 = vadd.f32 0.0, %v676
        %v678 = vpop.f32.mrb[0].mxu0
        %v679 = vpop.f32.mrb[0].mxu0
        %v680 = vadd.f32 0.0, %v679
        %v681 = vpop.f32.mrb[0].mxu0
        %682 = vdwg.mxu0
        %v683 = vadd.f32 %v618, %v677
        %v684 = vadd.f32 %v621, %v680
        %v685 = vld [vmem:[%s4] sm:$0xff]
        %v686 = vld [vmem:[%s4 + $0x8] sm:$0xff]
        %688 = vset.pattern.permute.xlu0 0
        %689 = vperm.xlu0 %688, %v685
        %v690 = vpop.permute.xlu0 %689
        %693 = vset.pattern.permute.xlu0 0
        %694 = vperm.xlu0 %693, %v686
        %v695 = vpop.permute.xlu0 %694
        %v697 = vadd.f32 %v683, %v690
        %v698 = vadd.f32 %v684, %v695
        %v699 = vadd.f32 %v697, %v292
        %v700 = vadd.f32 %v698, %v293
        %701 = vst [vmem:[%s290] sm:$0xff] %v699
        %702 = vst [vmem:[%s290 + $0x8] sm:$0xff] %v700
        %s703 = sand.u32 %s139, 1
        %s704 = scalar_lea.sflag [#allocation5], %s703
        %s705 = sand.u32 %s139, 1
        %s706 = smul.addr %s705, 16
        %s707 = scalar_lea.vmem [#allocation8], %s706
        // Predicated region
        $region87: #{tpu_custom_call.1} parent=73 // pred_check
          %p708 = pneg %p149
        $region88: #{tpu_custom_call.1} parent=73 // pred_check_branch
          %710 = sbr.rel (%p708) target = $region90
        $region89: #{tpu_custom_call.1} parent=73 // pred_region
          %s712 = ssub.s32 256, 256
          %713 = vsyncadd %s704, %s712
          %s714 = smul.addr %s21, 128
          %s715 = scalar_lea.hbm %s5, %s714
          %s716 = sshll.u32 %s707, 4
          %s717 = int_to_ptr.vmem [resolvable:$true] %s716
          %722 = dma.vmem_to_hbm [thread:$0]  %s717, 256, %s715, %s704, 128, 256, 8
        $region90: #{tpu_custom_call.1} parent=73 // pred_fallthru
          _
      $region74: #{tpu_custom_call.1} parent=5 // pred_fallthru
        _
      %p723 = scmp.le.s32.totalorder 2, %s16
      // Predicated region
      $region91: #{tpu_custom_call.1} parent=5 // pred_check
        %p724 = pneg %p723
      $region92: #{tpu_custom_call.1} parent=5 // pred_check_branch
        %726 = sbr.rel (%p724) target = $region94
      $region93: #{tpu_custom_call.1} parent=5 // pred_region
        %s727 = ssub.s32 %s16, 2
        // Predicated region
        $region95: #{tpu_custom_call.1} parent=93 // pred_check
          %p728 = pneg %p155
        $region96: #{tpu_custom_call.1} parent=93 // pred_check_branch
          %730 = sbr.rel (%p728) target = $region98
        $region97: #{tpu_custom_call.1} parent=93 // pred_region
          %s731 = sand.u32 %s140, 1
          %s732 = scalar_lea.sflag [#allocation5], %s731
          %s733 = sand.u32 %s140, 1
          %s734 = smul.addr %s733, 16
          %s735 = scalar_lea.vmem [#allocation8], %s734
          %736 = dma.done %s732, 256
        $region98: #{tpu_custom_call.1} parent=93 // pred_fallthru
          _
      $region94: #{tpu_custom_call.1} parent=5 // pred_fallthru
        _
    $region6: #{tpu_custom_call.1} parent=1 // loop_footer
      %s20 = sadd.s32 1, %s16
    $region7: #{tpu_custom_call.1} parent=1 // loop_footer_branch
      %15 = sbr.rel target = $region3
    $region8: #{tpu_custom_call.1} parent=1 // loop_exit
      _
    %737 = vsyncpa [#allocation4], 1
    %s738 = scalar_lea.sflag [#allocation4], 1
    %739 = vsyncpa %s738, 1
    %740 = vsyncpa [#allocation7], 1
    %741 = vsyncpa [#allocation5], 1
    %s742 = scalar_lea.sflag [#allocation5], 1
    %743 = vsyncpa %s742, 1

</llo_original>
